<compile_context>
chip_gen: v5e
topology: v5e:2x2
jax: 0.10.0
libtpu: 0.0.40
codegen_flags: <defaults>
</compile_context>

<pallas_src>
import functools
from typing import NamedTuple, Tuple

import jax
import jax.numpy as jnp
from jax.experimental import pallas as pl
from jax.experimental.pallas import tpu as pltpu

_LANE = 128
_SUBLANE = 8


def _round_up(n: int, m: int) -> int:
    return ((n + m - 1) // m) * m


class FixedLikelihoodParams(NamedTuple):
    layer_ws: Tuple[jax.Array, ...]   # each (in_pad, out_pad), bf16, pre-transposed
    layer_bs: Tuple[jax.Array, ...]   # each (1, out_pad), f32
    w_mu: jax.Array                   # (1, h_pad), f32
    b_mu: jax.Array                   # (1, 1), f32
    toeplitz: jax.Array               # (m_pad, out_pad), f32  (border-extended likelihood)


def prepare_params(weights, biases, w_mu, b_mu, likelihood,
                   matmul_dtype=jnp.bfloat16) -> FixedLikelihoodParams:
    """One-time parameter prep (kept OUT of the per-call jitted forward)."""
    ws, bs = [], []
    for w, b in zip(weights, biases):
        n_out_l, n_in_l = w.shape                       # PyTorch Linear: (out, in)
        ip, op = _round_up(n_in_l, _LANE), _round_up(n_out_l, _LANE)
        wt = jnp.zeros((ip, op), matmul_dtype).at[:n_in_l, :n_out_l].set(
            jnp.asarray(w).T.astype(matmul_dtype))
        bp = jnp.zeros((1, op), jnp.float32).at[0, :n_out_l].set(
            jnp.asarray(b).astype(jnp.float32))
        ws.append(wt)
        bs.append(bp)

    n_mu_in = w_mu.shape[1]
    hp = _round_up(n_mu_in, _LANE)
    w_mu_p = jnp.zeros((1, hp), jnp.float32).at[0, :n_mu_in].set(
        jnp.asarray(w_mu).astype(jnp.float32).reshape(-1))
    b_mu_p = jnp.asarray(b_mu).astype(jnp.float32).reshape(1, 1)

    lik = jnp.asarray(likelihood).astype(jnp.float32).reshape(-1)
    n_out = lik.shape[0]
    m_len = 2 * n_out - 1
    mp, pp = _round_up(m_len, _LANE), _round_up(n_out, _LANE)
    offs = jnp.arange(m_len) - (n_out - 1)                              # -(W-1) .. W-1
    gather_idx = jnp.clip(jnp.arange(n_out)[None, :] - offs[:, None], 0, n_out - 1)
    toe = lik[gather_idx]                                               # (2W-1, W)
    toe_p = jnp.zeros((mp, pp), jnp.float32).at[:m_len, :n_out].set(toe)

    return FixedLikelihoodParams(tuple(ws), tuple(bs), w_mu_p, b_mu_p, toe_p)


def _fixed_likelihood_kernel(*refs, n_layers: int, n_out: int):
    """Fused MLP -> mu readout -> shifted-likelihood interpolation for one batch tile.

    refs = (x, w_0, b_0, ..., w_{L-1}, b_{L-1}, w_mu, b_mu, toeplitz, out)
    """
    x_ref = refs[0]
    w_mu_ref, b_mu_ref, toe_ref = refs[1 + 2 * n_layers: 4 + 2 * n_layers]
    o_ref = refs[-1]

    if n_layers == 0:
        act = x_ref[...].astype(jnp.float32)
    else:
        h = x_ref[...]                                  # bf16 (TB, Cp), fed straight to the MXU
        act = None
        for l in range(n_layers):
            w_ref = refs[1 + 2 * l]
            b_ref = refs[2 + 2 * l]
            act = jnp.dot(h, w_ref[...], preferred_element_type=jnp.float32)   # f32 acc
            act = jnp.maximum(act + b_ref[...], 0.0)    # bias + ReLU on the VPU, f32
            # TODO(synk): training-mode Dropout masking (pltpu.prng_seed/prng_random_bits);
            # nn.Dropout is the identity at inference, which is what we implement here.
            h = act.astype(jnp.bfloat16)                # bf16 operand for the next MXU matmul

    # mu readout (H -> 1): lane-wise multiply + lane reduction in f32
    # (avoids a 1-lane-wide matmul and a masked partial store).
    mu = jnp.sum(act * w_mu_ref[...], axis=-1, keepdims=True) + b_mu_ref[...]   # (TB, 1)

    # grid_sample(bilinear, border, align_corners=True) == hat-weights @ Toeplitz(likelihood).
    shift = mu * ((n_out - 1) * 0.5)                    # pixel-space shift
    shift = jnp.clip(shift, -(n_out - 1.0), n_out - 1.0)
    m_pad = toe_ref.shape[0]
    offs = (jax.lax.broadcasted_iota(jnp.int32, (1, m_pad), 1).astype(jnp.float32)
            - (n_out - 1.0))                            # (1, Mp)
    hat = jnp.maximum(1.0 - jnp.abs(offs + shift), 0.0)                 # (TB, Mp) f32
    out = jnp.dot(hat, toe_ref[...], preferred_element_type=jnp.float32)  # (TB, Pp), f32 interp

    o_ref[...] = out.astype(o_ref.dtype)


@functools.partial(jax.jit, static_argnames=("n_output",))
def fixed_likelihood_forward(x, params: FixedLikelihoodParams, *, n_output: int):
    """FixedLikelihoodNet.forward (eval mode). x: (B, n_channel). Returns (B, n_output) f32."""
    batch, n_channel = x.shape
    n_layers = len(params.layer_ws)
    cp = params.layer_ws[0].shape[0] if n_layers else params.w_mu.shape[1]
    mp, pp = params.toeplitz.shape

    # Batch tiling: big tiles when the batch is large, one tile for small batches.
    tb = min(512, _round_up(batch, _SUBLANE))
    bp = _round_up(batch, tb)
    grid = (bp // tb,)

    # Pad + cast activations once; bf16 halves x HBM traffic into the kernel.
    x_p = jnp.zeros((bp, cp), jnp.bfloat16).at[:batch, :n_channel].set(
        x.astype(jnp.bfloat16))

    in_specs = [pl.BlockSpec((tb, cp), lambda i: (i, 0))]       # only x is tiled over batch
    operands = [x_p]
    for w, b in zip(params.layer_ws, params.layer_bs):          # weights stay VMEM-resident
        in_specs.append(pl.BlockSpec(w.shape, lambda i: (0, 0)))
        in_specs.append(pl.BlockSpec(b.shape, lambda i: (0, 0)))
        operands += [w, b]
    in_specs += [pl.BlockSpec(params.w_mu.shape, lambda i: (0, 0)),
                 pl.BlockSpec(params.b_mu.shape, lambda i: (0, 0)),
                 pl.BlockSpec(params.toeplitz.shape, lambda i: (0, 0))]
    operands += [params.w_mu, params.b_mu, params.toeplitz]

    flops = 2 * bp * mp * pp + 2 * bp * params.w_mu.size
    bytes_accessed = (x_p.size * 2 + params.toeplitz.size * 4 + bp * pp * 4
                      + params.w_mu.size * 4 + params.b_mu.size * 4)
    for w, b in zip(params.layer_ws, params.layer_bs):
        flops += 2 * bp * w.shape[0] * w.shape[1]
        bytes_accessed += w.size * 2 + b.size * 4

    kernel = functools.partial(_fixed_likelihood_kernel,
                               n_layers=n_layers, n_out=n_output)

    out = pl.pallas_call(
        kernel,
        out_shape=jax.ShapeDtypeStruct((bp, pp), jnp.float32),
        grid_spec=pltpu.PrefetchScalarGridSpec(
            num_scalar_prefetch=0,
            grid=grid,
            in_specs=in_specs,
            out_specs=pl.BlockSpec((tb, pp), lambda i: (i, 0)),
        ),
        compiler_params=pltpu.CompilerParams(
            # Batch tiles are independent -> shard across TCs on v7x; neutral on v5e/v6e.
            dimension_semantics=("parallel",),
            # Explicit budget: fits v7x's 64 MiB VMEM as well as v5e/v6e's 128 MiB.
            vmem_limit_bytes=32 * 1024 * 1024,
        ),
        cost_estimate=pl.CostEstimate(flops=int(flops), transcendentals=0,
                                      bytes_accessed=int(bytes_accessed)),
    )(*operands)

    return out[:batch, :n_output]


def reference_forward(x, weights, biases, w_mu, b_mu, likelihood):
    """Pure-JAX f32 reference of the PyTorch forward (eval mode; grid_sample with
    bilinear interpolation, padding_mode='border', align_corners=True)."""
    h = x
    for w, b in zip(weights, biases):
        h = jnp.maximum(h @ w.T + b, 0.0)
    mus = h @ w_mu.T + b_mu                                    # (B, 1)
    lik = likelihood.reshape(-1)
    n_out = lik.shape[0]
    gx = jnp.linspace(-1.0, 1.0, n_out)[None, :] + mus         # (B, n_out)
    ix = jnp.clip((gx + 1.0) * 0.5 * (n_out - 1), 0.0, n_out - 1.0)
    i0 = jnp.floor(ix)
    i1 = jnp.minimum(i0 + 1.0, n_out - 1.0)
    frac = ix - i0
    g0 = lik[i0.astype(jnp.int32)]
    g1 = lik[i1.astype(jnp.int32)]
    return (1.0 - frac) * g0 + frac * g1


if __name__ == "__main__":
    # Small shapes consistent with FixedLikelihoodNet(n_channel, n_hidden, n_output, ...).
    batch = 4
    n_channel = 24
    n_hidden = (32, 16)          # exercises the multi-hidden-layer path
    n_output = 21                # = n_likelihood
    sigma_init = 3.0
    std = 0.01                   # initialize(): normal(std=0.01), bias = 0

    key = jax.random.PRNGKey(0)
    kx, k0, k1, kmu = jax.random.split(key, 4)

    x = jax.random.normal(kx, (batch, n_channel), dtype=jnp.float32)

    # PyTorch nn.Linear layout: weight (out_features, in_features), bias (out_features,)
    w0 = std * jax.random.normal(k0, (n_hidden[0], n_channel), dtype=jnp.float32)
    b0 = jnp.zeros((n_hidden[0],), jnp.float32)
    w1 = std * jax.random.normal(k1, (n_hidden[1], n_hidden[0]), dtype=jnp.float32)
    b1 = jnp.zeros((n_hidden[1],), jnp.float32)
    w_mu = std * jax.random.normal(kmu, (1, n_hidden[1]), dtype=jnp.float32)
    b_mu = jnp.zeros((1,), jnp.float32)

    # likelihood param init: -(arange(W) - W//2)^2 / 2 / sigma_init^2, shape (1,1,1,W)
    likelihood = (-(jnp.arange(n_output, dtype=jnp.float32) - n_output // 2) ** 2
                  / 2.0 / sigma_init ** 2).reshape(1, 1, 1, n_output)

    params = prepare_params([w0, w1], [b0, b1], w_mu, b_mu, likelihood)

    out = fixed_likelihood_forward(x, params, n_output=n_output)
    out = jax.block_until_ready(out)

    ref = reference_forward(x, [w0, w1], [b0, b1], w_mu, b_mu, likelihood)
    assert out.shape == (batch, n_output), out.shape
    max_err = float(jnp.max(jnp.abs(out - ref)))
    # bf16 MXU operands (f32 accumulation) -> tolerance looser than pure-f32.
    assert max_err < 5e-2, f"mismatch vs reference: max_err={max_err}"

    print("KERNEL_OK")
</pallas_src>

<mosaic_0001>
module attributes {stable_mosaic.version = 11 : i64} {
  func.func @_fixed_likelihood_kernel(%arg0: i32, %arg1: memref<8x128xbf16, #tpu.memory_space<vmem>>, %arg2: memref<128x128xbf16, #tpu.memory_space<vmem>>, %arg3: memref<1x128xf32, #tpu.memory_space<vmem>>, %arg4: memref<128x128xbf16, #tpu.memory_space<vmem>>, %arg5: memref<1x128xf32, #tpu.memory_space<vmem>>, %arg6: memref<1x128xf32, #tpu.memory_space<vmem>>, %arg7: memref<1x1xf32, #tpu.memory_space<vmem>>, %arg8: memref<128x128xf32, #tpu.memory_space<vmem>>, %arg9: memref<8x128xf32, #tpu.memory_space<vmem>>) attributes {dimension_semantics = [#tpu.dimension_semantics<parallel>], iteration_bounds = array<i64: 1>, scalar_prefetch = 0 : i64, scratch_operands = 0 : i64, tpu.core_type = #tpu.core_type<tc>, window_params = [{transform_indices = @transform_0, window_bounds = array<i64: 8, 128>}, {pipeline_mode = #tpu.pipeline_mode<synchronous>, transform_indices = @transform_1, window_bounds = array<i64: 128, 128>}, {pipeline_mode = #tpu.pipeline_mode<synchronous>, transform_indices = @transform_2, window_bounds = array<i64: 1, 128>}, {pipeline_mode = #tpu.pipeline_mode<synchronous>, transform_indices = @transform_3, window_bounds = array<i64: 128, 128>}, {pipeline_mode = #tpu.pipeline_mode<synchronous>, transform_indices = @transform_4, window_bounds = array<i64: 1, 128>}, {pipeline_mode = #tpu.pipeline_mode<synchronous>, transform_indices = @transform_5, window_bounds = array<i64: 1, 128>}, {pipeline_mode = #tpu.pipeline_mode<synchronous>, transform_indices = @transform_6, window_bounds = array<i64: 1, 1>}, {pipeline_mode = #tpu.pipeline_mode<synchronous>, transform_indices = @transform_7, window_bounds = array<i64: 128, 128>}, {transform_indices = @transform_8, window_bounds = array<i64: 8, 128>}]} {
    %c0 = arith.constant 0 : index
    %c0_0 = arith.constant 0 : index
    %0 = vector.load %arg1[%c0, %c0_0] : memref<8x128xbf16, #tpu.memory_space<vmem>>, vector<8x128xbf16>
    %c0_1 = arith.constant 0 : index
    %c0_2 = arith.constant 0 : index
    %1 = vector.load %arg2[%c0_1, %c0_2] : memref<128x128xbf16, #tpu.memory_space<vmem>>, vector<128x128xbf16>
    %cst = arith.constant dense<0.000000e+00> : vector<8x128xf32>
    %2 = tpu.matmul %0, %1, %cst {dimension_numbers = #tpu.dot_dimension_numbers<[1], [0], [0], [1], [0, 0, 1, 1], [], []>} : vector<8x128xbf16>, vector<128x128xbf16>, vector<8x128xf32> -> vector<8x128xf32>
    %c0_3 = arith.constant 0 : index
    %c0_4 = arith.constant 0 : index
    %3 = vector.load %arg3[%c0_3, %c0_4] : memref<1x128xf32, #tpu.memory_space<vmem>>, vector<1x128xf32>
    %4 = vector.broadcast %3 : vector<1x128xf32> to vector<8x128xf32>
    %5 = arith.addf %2, %4 : vector<8x128xf32>
    %cst_5 = arith.constant 0.000000e+00 : f32
    %6 = vector.broadcast %cst_5 : f32 to vector<8x128xf32>
    %7 = arith.maximumf %5, %6 : vector<8x128xf32>
    %8 = arith.truncf %7 : vector<8x128xf32> to vector<8x128xbf16>
    %c0_6 = arith.constant 0 : index
    %c0_7 = arith.constant 0 : index
    %9 = vector.load %arg4[%c0_6, %c0_7] : memref<128x128xbf16, #tpu.memory_space<vmem>>, vector<128x128xbf16>
    %cst_8 = arith.constant dense<0.000000e+00> : vector<8x128xf32>
    %10 = tpu.matmul %8, %9, %cst_8 {dimension_numbers = #tpu.dot_dimension_numbers<[1], [0], [0], [1], [0, 0, 1, 1], [], []>} : vector<8x128xbf16>, vector<128x128xbf16>, vector<8x128xf32> -> vector<8x128xf32>
    %c0_9 = arith.constant 0 : index
    %c0_10 = arith.constant 0 : index
    %11 = vector.load %arg5[%c0_9, %c0_10] : memref<1x128xf32, #tpu.memory_space<vmem>>, vector<1x128xf32>
    %12 = vector.broadcast %11 : vector<1x128xf32> to vector<8x128xf32>
    %13 = arith.addf %10, %12 : vector<8x128xf32>
    %cst_11 = arith.constant 0.000000e+00 : f32
    %14 = vector.broadcast %cst_11 : f32 to vector<8x128xf32>
    %15 = arith.maximumf %13, %14 : vector<8x128xf32>
    %c0_12 = arith.constant 0 : index
    %c0_13 = arith.constant 0 : index
    %16 = vector.load %arg6[%c0_12, %c0_13] : memref<1x128xf32, #tpu.memory_space<vmem>>, vector<1x128xf32>
    %17 = vector.broadcast %16 : vector<1x128xf32> to vector<8x128xf32>
    %18 = arith.mulf %15, %17 : vector<8x128xf32>
    %cst_14 = arith.constant dense<0.000000e+00> : vector<8xf32>
    %19 = vector.multi_reduction <add>, %18, %cst_14 [1] : vector<8x128xf32> to vector<8xf32>
    %20 = vector.shape_cast %19 : vector<8xf32> to vector<8x1xf32>
    %c0_15 = arith.constant 0 : index
    %c0_16 = arith.constant 0 : index
    %21 = vector.load %arg7[%c0_15, %c0_16] : memref<1x1xf32, #tpu.memory_space<vmem>>, vector<1x1xf32>
    %22 = vector.broadcast %21 : vector<1x1xf32> to vector<8x1xf32>
    %23 = arith.addf %20, %22 : vector<8x1xf32>
    %cst_17 = arith.constant 1.000000e+01 : f32
    %24 = vector.broadcast %cst_17 : f32 to vector<8x1xf32>
    %25 = arith.mulf %23, %24 : vector<8x1xf32>
    %cst_18 = arith.constant -2.000000e+01 : f32
    %cst_19 = arith.constant 2.000000e+01 : f32
    %26 = vector.broadcast %cst_18 : f32 to vector<8x1xf32>
    %27 = arith.maximumf %26, %25 : vector<8x1xf32>
    %28 = vector.broadcast %cst_19 : f32 to vector<8x1xf32>
    %29 = arith.minimumf %28, %27 : vector<8x1xf32>
    %30 = tpu.iota {dimensions = array<i32: 1>} : vector<1x128xi32>
    %31 = arith.sitofp %30 : vector<1x128xi32> to vector<1x128xf32>
    %cst_20 = arith.constant 2.000000e+01 : f32
    %32 = vector.broadcast %cst_20 : f32 to vector<1x128xf32>
    %33 = arith.subf %31, %32 : vector<1x128xf32>
    %34 = vector.broadcast %33 : vector<1x128xf32> to vector<8x128xf32>
    %35 = vector.broadcast %29 : vector<8x1xf32> to vector<8x128xf32>
    %36 = arith.addf %34, %35 : vector<8x128xf32>
    %37 = math.absf %36 : vector<8x128xf32>
    %cst_21 = arith.constant 1.000000e+00 : f32
    %38 = vector.broadcast %cst_21 : f32 to vector<8x128xf32>
    %39 = arith.subf %38, %37 : vector<8x128xf32>
    %cst_22 = arith.constant 0.000000e+00 : f32
    %40 = vector.broadcast %cst_22 : f32 to vector<8x128xf32>
    %41 = arith.maximumf %39, %40 : vector<8x128xf32>
    %c0_23 = arith.constant 0 : index
    %c0_24 = arith.constant 0 : index
    %42 = vector.load %arg8[%c0_23, %c0_24] : memref<128x128xf32, #tpu.memory_space<vmem>>, vector<128x128xf32>
    %cst_25 = arith.constant dense<0.000000e+00> : vector<8x128xf32>
    %43 = tpu.matmul %41, %42, %cst_25 {dimension_numbers = #tpu.dot_dimension_numbers<[1], [0], [0], [1], [0, 0, 1, 1], [], []>} : vector<8x128xf32>, vector<128x128xf32>, vector<8x128xf32> -> vector<8x128xf32>
    %c0_26 = arith.constant 0 : index
    %c0_27 = arith.constant 0 : index
    %44 = vector.load %arg9[%c0_26, %c0_27] : memref<8x128xf32, #tpu.memory_space<vmem>>, vector<8x128xf32>
    tpu.vector_store %arg9[%c0_26, %c0_27], %43 {strides = array<i32>} : memref<8x128xf32, #tpu.memory_space<vmem>>, vector<8x128xf32>,
    return
  }
  func.func @transform_0(%arg0: i32) -> (i32, i32) {
    %c0_i32 = arith.constant 0 : i32
    %c0_i32_0 = arith.constant 0 : i32
    return %arg0, %c0_i32 : i32, i32
  }
  func.func @transform_1(%arg0: i32) -> (i32, i32) {
    %c0_i32 = arith.constant 0 : i32
    %c0_i32_0 = arith.constant 0 : i32
    %c0_i32_1 = arith.constant 0 : i32
    return %c0_i32, %c0_i32_0 : i32, i32
  }
  func.func @transform_2(%arg0: i32) -> (i32, i32) {
    %c0_i32 = arith.constant 0 : i32
    %c0_i32_0 = arith.constant 0 : i32
    %c0_i32_1 = arith.constant 0 : i32
    return %c0_i32, %c0_i32_0 : i32, i32
  }
  func.func @transform_3(%arg0: i32) -> (i32, i32) {
    %c0_i32 = arith.constant 0 : i32
    %c0_i32_0 = arith.constant 0 : i32
    %c0_i32_1 = arith.constant 0 : i32
    return %c0_i32, %c0_i32_0 : i32, i32
  }
  func.func @transform_4(%arg0: i32) -> (i32, i32) {
    %c0_i32 = arith.constant 0 : i32
    %c0_i32_0 = arith.constant 0 : i32
    %c0_i32_1 = arith.constant 0 : i32
    return %c0_i32, %c0_i32_0 : i32, i32
  }
  func.func @transform_5(%arg0: i32) -> (i32, i32) {
    %c0_i32 = arith.constant 0 : i32
    %c0_i32_0 = arith.constant 0 : i32
    %c0_i32_1 = arith.constant 0 : i32
    return %c0_i32, %c0_i32_0 : i32, i32
  }
  func.func @transform_6(%arg0: i32) -> (i32, i32) {
    %c0_i32 = arith.constant 0 : i32
    %c0_i32_0 = arith.constant 0 : i32
    %c0_i32_1 = arith.constant 0 : i32
    return %c0_i32, %c0_i32_0 : i32, i32
  }
  func.func @transform_7(%arg0: i32) -> (i32, i32) {
    %c0_i32 = arith.constant 0 : i32
    %c0_i32_0 = arith.constant 0 : i32
    %c0_i32_1 = arith.constant 0 : i32
    return %c0_i32, %c0_i32_0 : i32, i32
  }
  func.func @transform_8(%arg0: i32) -> (i32, i32) {
    %c0_i32 = arith.constant 0 : i32
    %c0_i32_0 = arith.constant 0 : i32
    return %arg0, %c0_i32 : i32, i32
  }
}

</mosaic_0001>

<llo_original>
// kernel: fixed_likelihood_forward.1
$region0: #{fixed_likelihood_forward.1}
  #allocation0 [shape = 'u32[]', space=smem, size = 0x4, offset = 0x4, fixed_abs, tag = 'smem constant byte address 0x4 - core index']
  #allocation1 [shape = 'u32[72,128]{1,0:T(1,128)}', space=vmem, size = 0x9000, scoped, tag = 'internal scratch']
  #allocation2 [shape = 'f32[1,1]{1,0:T(1,128)S(1)}', space=vmem, size = 0x200, scoped, tag = 'scoped memory for fixed_likelihood_forward.1']
  %s0 = inlined_call_operand.vmem [shape: bf16[8,128], index: 0, kind: input, shape index: {}]
  %s1 = inlined_call_operand.hbm [shape: bf16[128,128], index: 1, kind: input, shape index: {}]
  %s2 = inlined_call_operand.vmem [shape: f32[1,128], index: 2, kind: input, shape index: {}]
  %s3 = inlined_call_operand.hbm [shape: bf16[128,128], index: 3, kind: input, shape index: {}]
  %s4 = inlined_call_operand.vmem [shape: f32[1,128], index: 4, kind: input, shape index: {}]
  %s5 = inlined_call_operand.vmem [shape: f32[1,128], index: 5, kind: input, shape index: {}]
  %s6 = inlined_call_operand.<no memory space> [shape: f32[1,1], index: 6, kind: input, shape index: {}]
  %s7 = inlined_call_operand.hbm [shape: f32[128,128], index: 7, kind: input, shape index: {}]
  %s8 = inlined_call_operand.vmem [shape: f32[8,128], index: 8, kind: output, shape index: {}]
  %s9 = sld [smem:[#allocation0]]
  $region54: #{fixed_likelihood_forward.1} parent=0
    _
  %s11 = ssub.s32 1, %s9
  %s12 = scalar_select 0, %s11, %s9
  %v13 = vstv %s6
  %14 = vst [vmem:[#allocation2] sm:$0x1] %v13
  $region1: #{fixed_likelihood_forward.1} parent=0
    #allocation3 [shape = 'u8[32768]{0}', space=vmem, size = 0x8000, scoped, tag = 'input window, operand 1, single buffered']
    #allocation4 [shape = 's32[1]{0}', space=sflag, size = 0x4, scoped, tag = 'scoped memory for fixed_likelihood_forward.1']
    #allocation5 [shape = 'u8[32768]{0}', space=vmem, size = 0x8000, scoped, tag = 'input window, operand 3, single buffered']
    #allocation6 [shape = 's32[1]{0}', space=sflag, size = 0x4, scoped, tag = 'scoped memory for fixed_likelihood_forward.1']
    #allocation7 [shape = 'u8[65536]{0}', space=vmem, size = 0x10000, scoped, tag = 'input window, operand 7, single buffered']
    %15 = vsyncpa [#allocation4], 0
    %16 = vsyncpa [#allocation6], 0
    // Predicated region
    $region2: #{fixed_likelihood_forward.1} parent=1 // pred_check
      _
    $region3: #{fixed_likelihood_forward.1} parent=1 // pred_check_branch
      %18 = sbr.rel (0) target = $region5
    $region4: #{fixed_likelihood_forward.1} parent=1 // pred_region
      _
    $region5: #{fixed_likelihood_forward.1} parent=1 // pred_fallthru
      _
    // Predicated region
    $region6: #{fixed_likelihood_forward.1} parent=1 // pred_check
      _
    $region7: #{fixed_likelihood_forward.1} parent=1 // pred_check_branch
      %20 = sbr.rel (0) target = $region9
    $region8: #{fixed_likelihood_forward.1} parent=1 // pred_region
      %22 = vsyncadd [#allocation4], 0
      %s23 = sshll.u32 %s1, 4
      %s24 = int_to_ptr.hbm [resolvable:$true] %s23
      %s25 = sshll.u32 [#allocation3], 4
      %s26 = int_to_ptr.vmem [resolvable:$true] %s25
      %31 = dma.hbm_to_vmem [thread:$0]  %s24, 1024, %s26, [#allocation4], 64, 64, 4
    $region9: #{fixed_likelihood_forward.1} parent=1 // pred_fallthru
      _
    // Predicated region
    $region10: #{fixed_likelihood_forward.1} parent=1 // pred_check
      _
    $region11: #{fixed_likelihood_forward.1} parent=1 // pred_check_branch
      %33 = sbr.rel (0) target = $region13
    $region12: #{fixed_likelihood_forward.1} parent=1 // pred_region
      _
    $region13: #{fixed_likelihood_forward.1} parent=1 // pred_fallthru
      _
    // Predicated region
    $region14: #{fixed_likelihood_forward.1} parent=1 // pred_check
      _
    $region15: #{fixed_likelihood_forward.1} parent=1 // pred_check_branch
      %35 = sbr.rel (0) target = $region17
    $region16: #{fixed_likelihood_forward.1} parent=1 // pred_region
      %37 = vsyncadd [#allocation6], 0
      %s38 = sshll.u32 %s3, 4
      %s39 = int_to_ptr.hbm [resolvable:$true] %s38
      %s40 = sshll.u32 [#allocation5], 4
      %s41 = int_to_ptr.vmem [resolvable:$true] %s40
      %46 = dma.hbm_to_vmem [thread:$0]  %s39, 1024, %s41, [#allocation6], 64, 64, 4
    $region17: #{fixed_likelihood_forward.1} parent=1 // pred_fallthru
      _
    // Predicated region
    $region18: #{fixed_likelihood_forward.1} parent=1 // pred_check
      _
    $region19: #{fixed_likelihood_forward.1} parent=1 // pred_check_branch
      %48 = sbr.rel (0) target = $region21
    $region20: #{fixed_likelihood_forward.1} parent=1 // pred_region
      _
    $region21: #{fixed_likelihood_forward.1} parent=1 // pred_fallthru
      _
    // Predicated region
    $region22: #{fixed_likelihood_forward.1} parent=1 // pred_check
      _
    $region23: #{fixed_likelihood_forward.1} parent=1 // pred_check_branch
      %50 = sbr.rel (0) target = $region25
    $region24: #{fixed_likelihood_forward.1} parent=1 // pred_region
      _
    $region25: #{fixed_likelihood_forward.1} parent=1 // pred_fallthru
      _
    // Predicated region
    $region26: #{fixed_likelihood_forward.1} parent=1 // pred_check
      _
    $region27: #{fixed_likelihood_forward.1} parent=1 // pred_check_branch
      %52 = sbr.rel (0) target = $region29
    $region28: #{fixed_likelihood_forward.1} parent=1 // pred_region
      _
    $region29: #{fixed_likelihood_forward.1} parent=1 // pred_fallthru
      _
    // Predicated region
    $region30: #{fixed_likelihood_forward.1} parent=1 // pred_check
      _
    $region31: #{fixed_likelihood_forward.1} parent=1 // pred_check_branch
      %54 = sbr.rel (0) target = $region33
    $region32: #{fixed_likelihood_forward.1} parent=1 // pred_region
      %56 = vsyncadd [#allocation6], 0
      %s57 = sshll.u32 %s7, 4
      %s58 = int_to_ptr.hbm [resolvable:$true] %s57
      %s59 = sshll.u32 [#allocation7], 4
      %s60 = int_to_ptr.vmem [resolvable:$true] %s59
      %65 = dma.hbm_to_vmem [thread:$0]  %s58, 2048, %s60, [#allocation6], 128, 128, 8
    $region33: #{fixed_likelihood_forward.1} parent=1 // pred_fallthru
      _
    // Predicated region
    $region34: #{fixed_likelihood_forward.1} parent=1 // pred_check
      _
    $region35: #{fixed_likelihood_forward.1} parent=1 // pred_check_branch
      %67 = sbr.rel (0) target = $region37
    $region36: #{fixed_likelihood_forward.1} parent=1 // pred_region
      %69 = dma.done [#allocation4], 1024
    $region37: #{fixed_likelihood_forward.1} parent=1 // pred_fallthru
      _
    // Predicated region
    $region38: #{fixed_likelihood_forward.1} parent=1 // pred_check
      _
    $region39: #{fixed_likelihood_forward.1} parent=1 // pred_check_branch
      %71 = sbr.rel (0) target = $region41
    $region40: #{fixed_likelihood_forward.1} parent=1 // pred_region
      %73 = dma.done [#allocation6], 1024
    $region41: #{fixed_likelihood_forward.1} parent=1 // pred_fallthru
      _
    // Predicated region
    $region42: #{fixed_likelihood_forward.1} parent=1 // pred_check
      _
    $region43: #{fixed_likelihood_forward.1} parent=1 // pred_check_branch
      %75 = sbr.rel (0) target = $region45
    $region44: #{fixed_likelihood_forward.1} parent=1 // pred_region
      %77 = dma.done [#allocation6], 2048
    $region45: #{fixed_likelihood_forward.1} parent=1 // pred_fallthru
      _
    %v78 = vld [vmem:[%s0] sm:$0xf]
    %v79 = vld [vmem:[#allocation3] sm:$0xf]
    %v80 = vld [vmem:[#allocation3 + $0x4] sm:$0xf]
    %v81 = vld [vmem:[#allocation3 + $0x8] sm:$0xf]
    %v82 = vld [vmem:[#allocation3 + $0xc] sm:$0xf]
    %v83 = vld [vmem:[#allocation3 + $0x10] sm:$0xf]
    %v84 = vld [vmem:[#allocation3 + $0x14] sm:$0xf]
    %v85 = vld [vmem:[#allocation3 + $0x18] sm:$0xf]
    %v86 = vld [vmem:[#allocation3 + $0x1c] sm:$0xf]
    %v87 = vld [vmem:[#allocation3 + $0x20] sm:$0xf]
    %v88 = vld [vmem:[#allocation3 + $0x24] sm:$0xf]
    %v89 = vld [vmem:[#allocation3 + $0x28] sm:$0xf]
    %v90 = vld [vmem:[#allocation3 + $0x2c] sm:$0xf]
    %v91 = vld [vmem:[#allocation3 + $0x30] sm:$0xf]
    %v92 = vld [vmem:[#allocation3 + $0x34] sm:$0xf]
    %v93 = vld [vmem:[#allocation3 + $0x38] sm:$0xf]
    %v94 = vld [vmem:[#allocation3 + $0x3c] sm:$0xf]
    %v95 = vld [vmem:[%s2] sm:$0x1]
    %v97 = vperm.slane %v95, 0
    %v115 = vunpack.c.l.b16 %v79
    %v116 = vunpack.c.l.b16 %v80
    %v117 = vunpack.c.l.b16 %v81
    %v118 = vunpack.c.l.b16 %v82
    %v119 = vunpack.c.l.b16 %v83
    %v120 = vunpack.c.l.b16 %v84
    %v121 = vunpack.c.l.b16 %v85
    %v122 = vunpack.c.l.b16 %v86
    %v123 = vunpack.c.l.b16 %v87
    %v124 = vunpack.c.l.b16 %v88
    %v125 = vunpack.c.l.b16 %v89
    %v126 = vunpack.c.l.b16 %v90
    %v127 = vunpack.c.l.b16 %v91
    %v128 = vunpack.c.l.b16 %v92
    %v129 = vunpack.c.l.b16 %v93
    %v130 = vunpack.c.l.b16 %v94
    %v131 = vpack.c.b16 %v116, %v115
    %v132 = vpack.c.b16 %v118, %v117
    %v133 = vpack.c.b16 %v120, %v119
    %v134 = vpack.c.b16 %v122, %v121
    %v135 = vpack.c.b16 %v124, %v123
    %v136 = vpack.c.b16 %v126, %v125
    %v137 = vpack.c.b16 %v128, %v127
    %v138 = vpack.c.b16 %v130, %v129
    %147 = vmatpush.bf16.msra.mxu0 %v138
    %148 = vmatpush.bf16.msra.mxu0 %v137
    %149 = vmatpush.bf16.msra.mxu0 %v136
    %150 = vmatpush.bf16.msra.mxu0 %v135
    %151 = vmatpush.bf16.msra.mxu0 %v134
    %152 = vmatpush.bf16.msra.mxu0 %v133
    %153 = vmatpush.bf16.msra.mxu0 %v132
    %154 = vmatpush.bf16.msra.mxu0 %v131
    %155 = vmatmul.bf16.gmra.mxu0 %v78
    %v156 = vpop.f32.mrf.mxu0
    %v157 = vadd.f32 %v97, %v156
    %v158 = vpop.f32.mrf.mxu0
    %159 = vdwg.mxu0
    %v160 = vmax.f32 %v157, 0.0
    %v161 = vpack.c.bf16 %v160, %v160
    %v162 = vld [vmem:[#allocation5] sm:$0xf]
    %v163 = vld [vmem:[#allocation5 + $0x4] sm:$0xf]
    %v164 = vld [vmem:[#allocation5 + $0x8] sm:$0xf]
    %v165 = vld [vmem:[#allocation5 + $0xc] sm:$0xf]
    %v166 = vld [vmem:[#allocation5 + $0x10] sm:$0xf]
    %v167 = vld [vmem:[#allocation5 + $0x14] sm:$0xf]
    %v168 = vld [vmem:[#allocation5 + $0x18] sm:$0xf]
    %v169 = vld [vmem:[#allocation5 + $0x1c] sm:$0xf]
    %v170 = vld [vmem:[#allocation5 + $0x20] sm:$0xf]
    %v171 = vld [vmem:[#allocation5 + $0x24] sm:$0xf]
    %v172 = vld [vmem:[#allocation5 + $0x28] sm:$0xf]
    %v173 = vld [vmem:[#allocation5 + $0x2c] sm:$0xf]
    %v174 = vld [vmem:[#allocation5 + $0x30] sm:$0xf]
    %v175 = vld [vmem:[#allocation5 + $0x34] sm:$0xf]
    %v176 = vld [vmem:[#allocation5 + $0x38] sm:$0xf]
    %v177 = vld [vmem:[#allocation5 + $0x3c] sm:$0xf]
    %v178 = vld [vmem:[%s4] sm:$0x1]
    %v180 = vperm.slane %v178, 0
    %v198 = vunpack.c.l.b16 %v162
    %v199 = vunpack.c.l.b16 %v163
    %v200 = vunpack.c.l.b16 %v164
    %v201 = vunpack.c.l.b16 %v165
    %v202 = vunpack.c.l.b16 %v166
    %v203 = vunpack.c.l.b16 %v167
    %v204 = vunpack.c.l.b16 %v168
    %v205 = vunpack.c.l.b16 %v169
    %v206 = vunpack.c.l.b16 %v170
    %v207 = vunpack.c.l.b16 %v171
    %v208 = vunpack.c.l.b16 %v172
    %v209 = vunpack.c.l.b16 %v173
    %v210 = vunpack.c.l.b16 %v174
    %v211 = vunpack.c.l.b16 %v175
    %v212 = vunpack.c.l.b16 %v176
    %v213 = vunpack.c.l.b16 %v177
    %v214 = vpack.c.b16 %v199, %v198
    %v215 = vpack.c.b16 %v201, %v200
    %v216 = vpack.c.b16 %v203, %v202
    %v217 = vpack.c.b16 %v205, %v204
    %v218 = vpack.c.b16 %v207, %v206
    %v219 = vpack.c.b16 %v209, %v208
    %v220 = vpack.c.b16 %v211, %v210
    %v221 = vpack.c.b16 %v213, %v212
    %230 = vmatpush.bf16.msra.mxu0 %v221
    %231 = vmatpush.bf16.msra.mxu0 %v220
    %232 = vmatpush.bf16.msra.mxu0 %v219
    %233 = vmatpush.bf16.msra.mxu0 %v218
    %234 = vmatpush.bf16.msra.mxu0 %v217
    %235 = vmatpush.bf16.msra.mxu0 %v216
    %236 = vmatpush.bf16.msra.mxu0 %v215
    %237 = vmatpush.bf16.msra.mxu0 %v214
    %238 = vmatmul.bf16.gmra.mxu0 %v161
    %v239 = vpop.f32.mrf.mxu0
    %v240 = vadd.f32 %v180, %v239
    %v241 = vpop.f32.mrf.mxu0
    %242 = vdwg.mxu0
    %v243 = vmax.f32 %v240, 0.0
    %v244 = vld [vmem:[%s5] sm:$0x1]
    %v246 = vperm.slane %v244, 0
    %v248 = vmul.f32 %v243, %v246
    %249 = vadd.xlane.f32.xlu0 %v248
    %v250 = vpop.xlane.xlu0 %249
    %v251 = vld [vmem:[#allocation2] sm:$0x1]
    %v253 = vperm.slane %v251, 0
    %v255 = vadd.f32 %v250, %v253
    %v256 = vmul.f32 %v255, 10.0
    %v257 = vmax.f32 %v256, -20.0
    %v258 = vmin.f32 %v257, 20.0
    %v259 = vlaneseq
    %v260 = vand.u32 %v259, 127
    %v261 = vcvt.s32.f32 %v260
    %v262 = vsub.f32 %v261, 20.0
    %264 = vset.pattern.permute.xlu0 0
    %265 = vperm.xlu0 %264, %v258
    %v266 = vpop.permute.xlu0 %265
    %v268 = vadd.f32 %v262, %v266
    %v269 = vand.u32 2147483647, %v268
    %v270 = vsub.f32 1.0, %v269
    %v271 = vmax.f32 %v270, 0.0
    %v272 = vld [vmem:[#allocation7] sm:$0xff]
    %v273 = vld [vmem:[#allocation7 + $0x8] sm:$0xff]
    %v274 = vld [vmem:[#allocation7 + $0x10] sm:$0xff]
    %v275 = vld [vmem:[#allocation7 + $0x18] sm:$0xff]
    %v276 = vld [vmem:[#allocation7 + $0x20] sm:$0xff]
    %v277 = vld [vmem:[#allocation7 + $0x28] sm:$0xff]
    %v278 = vld [vmem:[#allocation7 + $0x30] sm:$0xff]
    %v279 = vld [vmem:[#allocation7 + $0x38] sm:$0xff]
    %v280 = vld [vmem:[#allocation7 + $0x40] sm:$0xff]
    %v281 = vld [vmem:[#allocation7 + $0x48] sm:$0xff]
    %v282 = vld [vmem:[#allocation7 + $0x50] sm:$0xff]
    %v283 = vld [vmem:[#allocation7 + $0x58] sm:$0xff]
    %v284 = vld [vmem:[#allocation7 + $0x60] sm:$0xff]
    %v285 = vld [vmem:[#allocation7 + $0x68] sm:$0xff]
    %v286 = vld [vmem:[#allocation7 + $0x70] sm:$0xff]
    %v287 = vld [vmem:[#allocation7 + $0x78] sm:$0xff]
    %288 = vmatpush.msra.mxu0 %v287
    %289 = vmatpush.msra.mxu0 %v286
    %290 = vmatpush.msra.mxu0 %v285
    %291 = vmatpush.msra.mxu0 %v284
    %292 = vmatpush.msra.mxu0 %v283
    %293 = vmatpush.msra.mxu0 %v282
    %294 = vmatpush.msra.mxu0 %v281
    %295 = vmatpush.msra.mxu0 %v280
    %296 = vmatpush.msra.mxu0 %v279
    %297 = vmatpush.msra.mxu0 %v278
    %298 = vmatpush.msra.mxu0 %v277
    %299 = vmatpush.msra.mxu0 %v276
    %300 = vmatpush.msra.mxu0 %v275
    %301 = vmatpush.msra.mxu0 %v274
    %302 = vmatpush.msra.mxu0 %v273
    %303 = vmatpush.msra.mxu0 %v272
    %304 = vmatmul.f32.gmra.mxu0 %v271
    %v305 = vpop.f32.mrf.mxu0
    %v306 = vadd.f32 0.0, %v305
    %307 = vdwg.mxu0
    %308 = vst [vmem:[%s8] sm:$0xff] %v306
    // Predicated region
    $region46: #{fixed_likelihood_forward.1} parent=1 // pred_check
      _
    $region47: #{fixed_likelihood_forward.1} parent=1 // pred_check_branch
      %310 = sbr.rel (0) target = $region49
    $region48: #{fixed_likelihood_forward.1} parent=1 // pred_region
      _
    $region49: #{fixed_likelihood_forward.1} parent=1 // pred_fallthru
      _
    // Predicated region
    $region50: #{fixed_likelihood_forward.1} parent=1 // pred_check
      _
    $region51: #{fixed_likelihood_forward.1} parent=1 // pred_check_branch
      %312 = sbr.rel (0) target = $region53
    $region52: #{fixed_likelihood_forward.1} parent=1 // pred_region
      _
    $region53: #{fixed_likelihood_forward.1} parent=1 // pred_fallthru
      _
    %313 = vsyncpa [#allocation4], 1
    %314 = vsyncpa [#allocation6], 1

</llo_original>
